<compile_context>
chip_gen: v7x
topology: tpu7x:2x2x1
jax: 0.10.0
libtpu: 0.0.40
codegen_flags: <defaults>
</compile_context>

<pallas_src>
import functools

import jax
import jax.numpy as jnp
from jax.experimental import pallas as pl
from jax.experimental.pallas import tpu as pltpu


def _round_up(x, m):
    return (x + m - 1) // m * m


def decode_step_kernel(emb_ref, h0_ref, c0_ref, enc_ref,
                       wa_h_ref, wa_e_ref, ba_ref, v_ref,
                       wih_e_ref, wih_w_ref, whh_ref, bg_ref,
                       wfc_ref, bfc_ref,
                       pred_ref, attn_ref, hout_ref, cout_ref):
    """One decode timestep; grid axis 0 iterates timesteps with resident state."""
    t = pl.program_id(0)

    # Initialise the VMEM-resident LSTM state (carried in the constant-index
    # output blocks across the whole grid) from the inputs at t == 0.
    @pl.when(t == 0)
    def _():
        hout_ref[...] = h0_ref[...]
        cout_ref[...] = c0_ref[...]

    emb = emb_ref[0]                       # [B, E]   (this step's embedded token)
    hid = hout_ref[...]                    # [B, H]   state from step t-1
    cel = cout_ref[...]                    # [B, H]
    enc_flat = enc_ref[...]                # [B*S, 2H] (resident across steps)
    B, H = hid.shape
    BS, twoH = enc_flat.shape
    S = BS // B

    # ---- Attention: softmax_S( v . tanh(W_a [hid ; enc] + b_a) ) ----
    # The concat is avoided by splitting W_a into hidden / encoder parts
    # (done once in prepare_params).
    hid_part = jnp.dot(hid, wa_h_ref[...], preferred_element_type=jnp.float32)        # [B, H]
    enc_part = jnp.dot(enc_flat, wa_e_ref[...], preferred_element_type=jnp.float32)   # [B*S, H]
    # The reshapes below are layout-preserving (S is a multiple of 8 sublanes).
    energy = jnp.tanh(enc_part.reshape(B, S, H) + hid_part[:, None, :] + ba_ref[...][None])
    scores = jnp.sum(energy * v_ref[...][None], axis=-1)                               # [B, S]
    scores = scores - jnp.max(scores, axis=-1, keepdims=True)
    e = jnp.exp(scores)
    attn = e * pl.reciprocal(jnp.sum(e, axis=-1, keepdims=True), approx=True)          # [B, S]
    attn_ref[0] = attn

    # weighted context = bmm(attn[B,1,S], enc[B,S,2H]) -> [B, 2H]
    weighted = jnp.sum(attn[:, :, None] * enc_flat.reshape(B, S, twoH), axis=1)

    # ---- LSTM single step (PyTorch gate order: i, f, g, o) ----
    # rnn_input = cat(embedded, weighted); concat avoided by the pre-split W_ih.
    gates = (jnp.dot(emb, wih_e_ref[...], preferred_element_type=jnp.float32)
             + jnp.dot(weighted, wih_w_ref[...], preferred_element_type=jnp.float32)
             + jnp.dot(hid, whh_ref[...], preferred_element_type=jnp.float32)
             + bg_ref[...])                                                             # [B, 4H]
    i = jax.nn.sigmoid(gates[:, 0:H])
    f = jax.nn.sigmoid(gates[:, H:2 * H])
    g = jnp.tanh(gates[:, 2 * H:3 * H])
    o = jax.nn.sigmoid(gates[:, 3 * H:4 * H])
    c_new = f * cel + i * g
    h_new = o * jnp.tanh(c_new)
    hout_ref[...] = h_new                 # carried to the next grid step, written
    cout_ref[...] = c_new                 # back to HBM only once, after the grid.

    # ---- fc_out: weights pre-padded to a 128-lane multiple -> full-width store ----
    pred_ref[0] = (jnp.dot(h_new, wfc_ref[...], preferred_element_type=jnp.float32)
                   + bfc_ref[...])


def prepare_params(params):
    """One-time, hoisted weight preparation (run once, NOT per decode step)."""
    H = params['w_hh'].shape[1]
    E = params['embedding'].shape[1]
    V = params['fc_w'].shape[0]
    VP = _round_up(V, 128)                 # lane-dense logits slab width

    wa_T = params['attn_w'].T              # [3H, H]
    wih_T = params['w_ih'].T               # [E + 2H, 4H]
    prep = {
        'embedding': params['embedding'],                       # [V, E]
        'wa_h':  wa_T[:H],                                      # [H, H]
        'wa_e':  wa_T[H:],                                      # [2H, H]
        'ba':    params['attn_b'][None, :],                     # [1, H]
        'v':     params['v_w'],                                 # [1, H]
        'wih_e': wih_T[:E],                                     # [E, 4H]
        'wih_w': wih_T[E:],                                     # [2H, 4H]
        'whh':   params['w_hh'].T,                              # [H, 4H]
        'b_gates': (params['b_ih'] + params['b_hh'])[None, :],  # [1, 4H] (fused bias)
        'wfc':   jnp.pad(params['fc_w'].T, ((0, 0), (0, VP - V))),   # [H, VP]
        'bfc':   jnp.pad(params['fc_b'], (0, VP - V))[None, :],      # [1, VP]
    }
    return prep, V


@functools.partial(jax.jit, static_argnames=('vocab_len',))
def double_vocab_decode(tokens, hidden, cell, encoder_outputs, prep, *, vocab_len):
    """Teacher-forced decode: applies the module's forward() T times in ONE pallas_call."""
    T, B = tokens.shape
    S = encoder_outputs.shape[1]
    twoH = encoder_outputs.shape[2]
    H = hidden.shape[1]
    E = prep['embedding'].shape[1]
    VP = prep['wfc'].shape[1]

    # Embedding gather for the whole sequence at once (glue, outside the kernel).
    embedded = jnp.take(prep['embedding'], tokens, axis=0)       # [T, B, E]
    # Pre-flatten encoder outputs so the attention matmul is a plain 2D dot.
    enc_flat = encoder_outputs.reshape(B * S, twoH)              # [B*S, 2H]

    const2 = lambda t: (0, 0)
    grid_spec = pltpu.PrefetchScalarGridSpec(
        num_scalar_prefetch=0,
        grid=(T,),
        in_specs=[
            pl.BlockSpec((1, B, E), lambda t: (t, 0, 0)),   # embedded token (per step)
            pl.BlockSpec((B, H), const2),                   # initial hidden
            pl.BlockSpec((B, H), const2),                   # initial cell
            pl.BlockSpec((B * S, twoH), const2),            # encoder outputs (resident)
            pl.BlockSpec((H, H), const2),                   # wa_h      (resident weights)
            pl.BlockSpec((twoH, H), const2),                # wa_e
            pl.BlockSpec((1, H), const2),                   # attn bias
            pl.BlockSpec((1, H), const2),                   # attention v
            pl.BlockSpec((E, 4 * H), const2),               # wih (embedded part)
            pl.BlockSpec((twoH, 4 * H), const2),            # wih (weighted part)
            pl.BlockSpec((H, 4 * H), const2),               # whh
            pl.BlockSpec((1, 4 * H), const2),               # fused gate bias
            pl.BlockSpec((H, VP), const2),                  # fc_out weight (lane-padded)
            pl.BlockSpec((1, VP), const2),                  # fc_out bias   (lane-padded)
        ],
        out_specs=(
            pl.BlockSpec((1, B, VP), lambda t: (t, 0, 0)),  # per-step logits (lane-dense)
            pl.BlockSpec((1, B, S), lambda t: (t, 0, 0)),   # per-step attention weights
            pl.BlockSpec((B, H), const2),                   # final hidden (carried state)
            pl.BlockSpec((B, H), const2),                   # final cell   (carried state)
        ),
    )

    preds_pad, attns, h_out, c_out = pl.pallas_call(
        decode_step_kernel,
        out_shape=(
            jax.ShapeDtypeStruct((T, B, VP), jnp.float32),
            jax.ShapeDtypeStruct((T, B, S), jnp.float32),
            jax.ShapeDtypeStruct((B, H), jnp.float32),
            jax.ShapeDtypeStruct((B, H), jnp.float32),
        ),
        grid_spec=grid_spec,
        compiler_params=pltpu.CompilerParams(
            dimension_semantics=("arbitrary",)),   # state carries across T -> sequential
    )(embedded, hidden, cell, enc_flat,
      prep['wa_h'], prep['wa_e'], prep['ba'], prep['v'],
      prep['wih_e'], prep['wih_w'], prep['whh'], prep['b_gates'],
      prep['wfc'], prep['bfc'])

    preds = preds_pad[:, :, :vocab_len]     # drop the lane padding
    return preds, attns, h_out, c_out


def double_vocab_decoder_lstm(input_seq, hidden, cell, encoder_outputs, prep, vocab_len):
    """Single decode step == the PyTorch module's forward()."""
    preds, attns, h_out, c_out = double_vocab_decode(
        input_seq[None, :], hidden, cell, encoder_outputs, prep, vocab_len=vocab_len)
    # PyTorch returns attn with shape [B, 1, S] (after unsqueeze(1)).
    return preds[0], attns[0][:, None, :], h_out, c_out


def reference(input_seq, hidden, cell, enc, p):
    """Pure-JAX mirror of the PyTorch forward pass (for correctness check)."""
    emb = jnp.take(p['embedding'], input_seq, axis=0)
    B, S, _ = enc.shape
    H = hidden.shape[1]
    hid_rep = jnp.broadcast_to(hidden[:, None, :], (B, S, H))
    cat = jnp.concatenate([hid_rep, enc], axis=-1)
    energy = jnp.tanh(cat @ p['attn_w'].T + p['attn_b'])
    scores = (energy @ p['v_w'].T)[..., 0]
    attn = jax.nn.softmax(scores, axis=1)
    weighted = jnp.einsum('bs,bsk->bk', attn, enc)
    rnn_in = jnp.concatenate([emb, weighted], axis=-1)
    gates = rnn_in @ p['w_ih'].T + p['b_ih'] + hidden @ p['w_hh'].T + p['b_hh']
    i = jax.nn.sigmoid(gates[:, :H])
    f = jax.nn.sigmoid(gates[:, H:2 * H])
    g = jnp.tanh(gates[:, 2 * H:3 * H])
    o = jax.nn.sigmoid(gates[:, 3 * H:])
    c_new = f * cell + i * g
    h_new = o * jnp.tanh(c_new)
    pred = h_new @ p['fc_w'].T + p['fc_b']
    return pred, attn[:, None, :], h_new, c_new


if __name__ == "__main__":
    # Small shapes consistent with the module (bidir=True, gnn_dims=-1):
    V, E, H, S, B, T = 50, 16, 32, 8, 2, 6   # vocab, input_dim, dec_hid_dim, src_len, batch, steps

    key = jax.random.PRNGKey(0)
    keys = jax.random.split(key, 14)

    def rnd(k, shape, scale=0.1):
        return jax.random.normal(k, shape, dtype=jnp.float32) * scale

    params = {
        'embedding': rnd(keys[0], (V, E)).at[3].set(0.0),   # padding_idx=3 -> zero row
        'attn_w':    rnd(keys[1], (H, 3 * H)),              # attention.attn.weight
        'attn_b':    rnd(keys[2], (H,)),                    # attention.attn.bias
        'v_w':       rnd(keys[3], (1, H)),                  # attention.v.weight (no bias)
        'w_ih':      rnd(keys[4], (4 * H, 2 * H + E)),      # rnn.weight_ih_l0
        'w_hh':      rnd(keys[5], (4 * H, H)),              # rnn.weight_hh_l0
        'b_ih':      rnd(keys[6], (4 * H,)),
        'b_hh':      rnd(keys[7], (4 * H,)),
        'fc_w':      rnd(keys[8], (V, H)),                  # fc_out.weight
        'fc_b':      rnd(keys[9], (V,)),                    # fc_out.bias
    }

    # One-time weight preparation (hoisted out of the decode hot path).
    prep, vocab_len = prepare_params(params)

    input_seq = jnp.array([5, 3], dtype=jnp.int32)          # includes the padding idx
    hidden = rnd(keys[10], (B, H))
    cell = rnd(keys[11], (B, H))
    encoder_outputs = rnd(keys[12], (B, S, 2 * H))

    # Tolerance is loosened slightly because the kernel uses the EUP's
    # approximate reciprocal for the softmax normalization.
    RTOL = ATOL = 2e-3

    # ---- single-step check (== module.forward) ----
    outs = double_vocab_decoder_lstm(input_seq, hidden, cell, encoder_outputs, prep, vocab_len)
    outs = jax.block_until_ready(outs)
    refs = reference(input_seq, hidden, cell, encoder_outputs, params)
    for got, want in zip(outs, refs):
        assert got.shape == want.shape, (got.shape, want.shape)
        assert jnp.allclose(got, want, rtol=RTOL, atol=ATOL), \
            float(jnp.max(jnp.abs(got - want)))

    # ---- fused multi-step (teacher-forced) check: one pallas_call for T steps ----
    tokens = jax.random.randint(keys[13], (T, B), 0, V).astype(jnp.int32)
    tokens = tokens.at[0, 1].set(3)   # exercise the padding index too
    preds, attns, h_T, c_T = jax.block_until_ready(
        double_vocab_decode(tokens, hidden, cell, encoder_outputs, prep, vocab_len=vocab_len))

    h_ref, c_ref = hidden, cell
    for step in range(T):
        p_ref, a_ref, h_ref, c_ref = reference(tokens[step], h_ref, c_ref,
                                               encoder_outputs, params)
        assert jnp.allclose(preds[step], p_ref, rtol=RTOL, atol=ATOL), \
            float(jnp.max(jnp.abs(preds[step] - p_ref)))
        assert jnp.allclose(attns[step], a_ref[:, 0, :], rtol=RTOL, atol=ATOL), \
            float(jnp.max(jnp.abs(attns[step] - a_ref[:, 0, :])))
    assert jnp.allclose(h_T, h_ref, rtol=RTOL, atol=ATOL), \
        float(jnp.max(jnp.abs(h_T - h_ref)))
    assert jnp.allclose(c_T, c_ref, rtol=RTOL, atol=ATOL), \
        float(jnp.max(jnp.abs(c_T - c_ref)))

    print("KERNEL_OK")
</pallas_src>

<mosaic_0001>
module attributes {stable_mosaic.version = 11 : i64} {
  func.func @decode_step_kernel(%arg0: i32, %arg1: memref<1x2x16xf32, #tpu.memory_space<vmem>>, %arg2: memref<2x32xf32, #tpu.memory_space<vmem>>, %arg3: memref<2x32xf32, #tpu.memory_space<vmem>>, %arg4: memref<16x64xf32, #tpu.memory_space<vmem>>, %arg5: memref<32x32xf32, #tpu.memory_space<vmem>>, %arg6: memref<64x32xf32, #tpu.memory_space<vmem>>, %arg7: memref<1x32xf32, #tpu.memory_space<vmem>>, %arg8: memref<1x32xf32, #tpu.memory_space<vmem>>, %arg9: memref<16x128xf32, #tpu.memory_space<vmem>>, %arg10: memref<64x128xf32, #tpu.memory_space<vmem>>, %arg11: memref<32x128xf32, #tpu.memory_space<vmem>>, %arg12: memref<1x128xf32, #tpu.memory_space<vmem>>, %arg13: memref<32x128xf32, #tpu.memory_space<vmem>>, %arg14: memref<1x128xf32, #tpu.memory_space<vmem>>, %arg15: memref<1x2x128xf32, #tpu.memory_space<vmem>>, %arg16: memref<1x2x8xf32, #tpu.memory_space<vmem>>, %arg17: memref<2x32xf32, #tpu.memory_space<vmem>>, %arg18: memref<2x32xf32, #tpu.memory_space<vmem>>) attributes {dimension_semantics = [#tpu.dimension_semantics<arbitrary>], iteration_bounds = array<i64: 1>, scalar_prefetch = 0 : i64, scratch_operands = 0 : i64, tpu.core_type = #tpu.core_type<tc>, window_params = [{transform_indices = @transform_0, window_bounds = array<i64: 1, 2, 16>}, {pipeline_mode = #tpu.pipeline_mode<synchronous>, transform_indices = @transform_1, window_bounds = array<i64: 2, 32>}, {pipeline_mode = #tpu.pipeline_mode<synchronous>, transform_indices = @transform_2, window_bounds = array<i64: 2, 32>}, {pipeline_mode = #tpu.pipeline_mode<synchronous>, transform_indices = @transform_3, window_bounds = array<i64: 16, 64>}, {pipeline_mode = #tpu.pipeline_mode<synchronous>, transform_indices = @transform_4, window_bounds = array<i64: 32, 32>}, {pipeline_mode = #tpu.pipeline_mode<synchronous>, transform_indices = @transform_5, window_bounds = array<i64: 64, 32>}, {pipeline_mode = #tpu.pipeline_mode<synchronous>, transform_indices = @transform_6, window_bounds = array<i64: 1, 32>}, {pipeline_mode = #tpu.pipeline_mode<synchronous>, transform_indices = @transform_7, window_bounds = array<i64: 1, 32>}, {pipeline_mode = #tpu.pipeline_mode<synchronous>, transform_indices = @transform_8, window_bounds = array<i64: 16, 128>}, {pipeline_mode = #tpu.pipeline_mode<synchronous>, transform_indices = @transform_9, window_bounds = array<i64: 64, 128>}, {pipeline_mode = #tpu.pipeline_mode<synchronous>, transform_indices = @transform_10, window_bounds = array<i64: 32, 128>}, {pipeline_mode = #tpu.pipeline_mode<synchronous>, transform_indices = @transform_11, window_bounds = array<i64: 1, 128>}, {pipeline_mode = #tpu.pipeline_mode<synchronous>, transform_indices = @transform_12, window_bounds = array<i64: 32, 128>}, {pipeline_mode = #tpu.pipeline_mode<synchronous>, transform_indices = @transform_13, window_bounds = array<i64: 1, 128>}, {transform_indices = @transform_14, window_bounds = array<i64: 1, 2, 128>}, {transform_indices = @transform_15, window_bounds = array<i64: 1, 2, 8>}, {pipeline_mode = #tpu.pipeline_mode<synchronous>, transform_indices = @transform_16, window_bounds = array<i64: 2, 32>}, {pipeline_mode = #tpu.pipeline_mode<synchronous>, transform_indices = @transform_17, window_bounds = array<i64: 2, 32>}]} {
    %c0_i32 = arith.constant 0 : i32
    %0 = arith.cmpi eq, %arg0, %c0_i32 : i32
    %1 = arith.extui %0 : i1 to i32
    %c0_i32_0 = arith.constant 0 : i32
    %2 = arith.cmpi ne, %1, %c0_i32_0 : i32
    scf.if %2 {
      %c0_51 = arith.constant 0 : index
      %c0_52 = arith.constant 0 : index
      %90 = vector.load %arg2[%c0_51, %c0_52] : memref<2x32xf32, #tpu.memory_space<vmem>>, vector<2x32xf32>
      %c0_53 = arith.constant 0 : index
      %c0_54 = arith.constant 0 : index
      %91 = vector.load %arg17[%c0_53, %c0_54] : memref<2x32xf32, #tpu.memory_space<vmem>>, vector<2x32xf32>
      tpu.vector_store %arg17[%c0_53, %c0_54], %90 {strides = array<i32>} : memref<2x32xf32, #tpu.memory_space<vmem>>, vector<2x32xf32>,
      %c0_55 = arith.constant 0 : index
      %c0_56 = arith.constant 0 : index
      %92 = vector.load %arg3[%c0_55, %c0_56] : memref<2x32xf32, #tpu.memory_space<vmem>>, vector<2x32xf32>
      %c0_57 = arith.constant 0 : index
      %c0_58 = arith.constant 0 : index
      %93 = vector.load %arg18[%c0_57, %c0_58] : memref<2x32xf32, #tpu.memory_space<vmem>>, vector<2x32xf32>
      tpu.vector_store %arg18[%c0_57, %c0_58], %92 {strides = array<i32>} : memref<2x32xf32, #tpu.memory_space<vmem>>, vector<2x32xf32>,
    } else {
    }
    %c0 = arith.constant 0 : index
    %c0_1 = arith.constant 0 : index
    %c0_2 = arith.constant 0 : index
    %3 = vector.load %arg1[%c0, %c0_1, %c0_2] : memref<1x2x16xf32, #tpu.memory_space<vmem>>, vector<1x2x16xf32>
    %4 = vector.shape_cast %3 : vector<1x2x16xf32> to vector<2x16xf32>
    %c0_3 = arith.constant 0 : index
    %c0_4 = arith.constant 0 : index
    %5 = vector.load %arg17[%c0_3, %c0_4] : memref<2x32xf32, #tpu.memory_space<vmem>>, vector<2x32xf32>
    %c0_5 = arith.constant 0 : index
    %c0_6 = arith.constant 0 : index
    %6 = vector.load %arg18[%c0_5, %c0_6] : memref<2x32xf32, #tpu.memory_space<vmem>>, vector<2x32xf32>
    %c0_7 = arith.constant 0 : index
    %c0_8 = arith.constant 0 : index
    %7 = vector.load %arg4[%c0_7, %c0_8] : memref<16x64xf32, #tpu.memory_space<vmem>>, vector<16x64xf32>
    %c0_9 = arith.constant 0 : index
    %c0_10 = arith.constant 0 : index
    %8 = vector.load %arg5[%c0_9, %c0_10] : memref<32x32xf32, #tpu.memory_space<vmem>>, vector<32x32xf32>
    %cst = arith.constant dense<0.000000e+00> : vector<2x32xf32>
    %9 = tpu.matmul %5, %8, %cst {dimension_numbers = #tpu.dot_dimension_numbers<[1], [0], [0], [1], [0, 0, 1, 1], [], []>} : vector<2x32xf32>, vector<32x32xf32>, vector<2x32xf32> -> vector<2x32xf32>
    %c0_11 = arith.constant 0 : index
    %c0_12 = arith.constant 0 : index
    %10 = vector.load %arg6[%c0_11, %c0_12] : memref<64x32xf32, #tpu.memory_space<vmem>>, vector<64x32xf32>
    %cst_13 = arith.constant dense<0.000000e+00> : vector<16x32xf32>
    %11 = tpu.matmul %7, %10, %cst_13 {dimension_numbers = #tpu.dot_dimension_numbers<[1], [0], [0], [1], [0, 0, 1, 1], [], []>} : vector<16x64xf32>, vector<64x32xf32>, vector<16x32xf32> -> vector<16x32xf32>
    %12 = vector.shape_cast %11 : vector<16x32xf32> to vector<2x8x32xf32>
    %13 = vector.shape_cast %9 : vector<2x32xf32> to vector<2x1x32xf32>
    %14 = vector.broadcast %13 : vector<2x1x32xf32> to vector<2x8x32xf32>
    %15 = arith.addf %12, %14 : vector<2x8x32xf32>
    %c0_14 = arith.constant 0 : index
    %c0_15 = arith.constant 0 : index
    %16 = vector.load %arg7[%c0_14, %c0_15] : memref<1x32xf32, #tpu.memory_space<vmem>>, vector<1x32xf32>
    %17 = vector.shape_cast %16 : vector<1x32xf32> to vector<1x1x32xf32>
    %18 = vector.broadcast %17 : vector<1x1x32xf32> to vector<2x8x32xf32>
    %19 = arith.addf %15, %18 : vector<2x8x32xf32>
    %20 = math.tanh %19 : vector<2x8x32xf32>
    %c0_16 = arith.constant 0 : index
    %c0_17 = arith.constant 0 : index
    %21 = vector.load %arg8[%c0_16, %c0_17] : memref<1x32xf32, #tpu.memory_space<vmem>>, vector<1x32xf32>
    %22 = vector.shape_cast %21 : vector<1x32xf32> to vector<1x1x32xf32>
    %23 = vector.broadcast %22 : vector<1x1x32xf32> to vector<2x8x32xf32>
    %24 = arith.mulf %20, %23 : vector<2x8x32xf32>
    %cst_18 = arith.constant dense<0.000000e+00> : vector<2x8xf32>
    %25 = vector.multi_reduction <add>, %24, %cst_18 [2] : vector<2x8x32xf32> to vector<2x8xf32>
    %cst_19 = arith.constant dense<0xFF800000> : vector<2xf32>
    %26 = vector.multi_reduction <maximumf>, %25, %cst_19 [1] : vector<2x8xf32> to vector<2xf32>
    %27 = vector.shape_cast %26 : vector<2xf32> to vector<2x1xf32>
    %28 = vector.broadcast %27 : vector<2x1xf32> to vector<2x8xf32>
    %29 = arith.subf %25, %28 : vector<2x8xf32>
    %30 = math.exp %29 : vector<2x8xf32>
    %cst_20 = arith.constant dense<0.000000e+00> : vector<2xf32>
    %31 = vector.multi_reduction <add>, %30, %cst_20 [1] : vector<2x8xf32> to vector<2xf32>
    %32 = vector.shape_cast %31 : vector<2xf32> to vector<2x1xf32>
    %33 = tpu.reciprocal %32 {approx = true} : vector<2x1xf32> -> vector<2x1xf32>
    %34 = vector.broadcast %33 : vector<2x1xf32> to vector<2x8xf32>
    %35 = arith.mulf %30, %34 : vector<2x8xf32>
    %c0_21 = arith.constant 0 : index
    %c0_22 = arith.constant 0 : index
    %c0_23 = arith.constant 0 : index
    %36 = vector.load %arg16[%c0_21, %c0_22, %c0_23] : memref<1x2x8xf32, #tpu.memory_space<vmem>>, vector<1x2x8xf32>
    %37 = vector.shape_cast %36 : vector<1x2x8xf32> to vector<2x8xf32>
    %38 = vector.shape_cast %35 : vector<2x8xf32> to vector<1x2x8xf32>
    tpu.vector_store %arg16[%c0_21, %c0_22, %c0_23], %38 {strides = array<i32>} : memref<1x2x8xf32, #tpu.memory_space<vmem>>, vector<1x2x8xf32>,
    %39 = vector.shape_cast %35 : vector<2x8xf32> to vector<2x8x1xf32>
    %40 = vector.shape_cast %7 : vector<16x64xf32> to vector<2x8x64xf32>
    %41 = vector.broadcast %39 : vector<2x8x1xf32> to vector<2x8x64xf32>
    %42 = arith.mulf %41, %40 : vector<2x8x64xf32>
    %cst_24 = arith.constant dense<0.000000e+00> : vector<2x64xf32>
    %43 = vector.multi_reduction <add>, %42, %cst_24 [1] : vector<2x8x64xf32> to vector<2x64xf32>
    %c0_25 = arith.constant 0 : index
    %c0_26 = arith.constant 0 : index
    %44 = vector.load %arg9[%c0_25, %c0_26] : memref<16x128xf32, #tpu.memory_space<vmem>>, vector<16x128xf32>
    %cst_27 = arith.constant dense<0.000000e+00> : vector<2x128xf32>
    %45 = tpu.matmul %4, %44, %cst_27 {dimension_numbers = #tpu.dot_dimension_numbers<[1], [0], [0], [1], [0, 0, 1, 1], [], []>} : vector<2x16xf32>, vector<16x128xf32>, vector<2x128xf32> -> vector<2x128xf32>
    %c0_28 = arith.constant 0 : index
    %c0_29 = arith.constant 0 : index
    %46 = vector.load %arg10[%c0_28, %c0_29] : memref<64x128xf32, #tpu.memory_space<vmem>>, vector<64x128xf32>
    %cst_30 = arith.constant dense<0.000000e+00> : vector<2x128xf32>
    %47 = tpu.matmul %43, %46, %cst_30 {dimension_numbers = #tpu.dot_dimension_numbers<[1], [0], [0], [1], [0, 0, 1, 1], [], []>} : vector<2x64xf32>, vector<64x128xf32>, vector<2x128xf32> -> vector<2x128xf32>
    %48 = arith.addf %45, %47 : vector<2x128xf32>
    %c0_31 = arith.constant 0 : index
    %c0_32 = arith.constant 0 : index
    %49 = vector.load %arg11[%c0_31, %c0_32] : memref<32x128xf32, #tpu.memory_space<vmem>>, vector<32x128xf32>
    %cst_33 = arith.constant dense<0.000000e+00> : vector<2x128xf32>
    %50 = tpu.matmul %5, %49, %cst_33 {dimension_numbers = #tpu.dot_dimension_numbers<[1], [0], [0], [1], [0, 0, 1, 1], [], []>} : vector<2x32xf32>, vector<32x128xf32>, vector<2x128xf32> -> vector<2x128xf32>
    %51 = arith.addf %48, %50 : vector<2x128xf32>
    %c0_34 = arith.constant 0 : index
    %c0_35 = arith.constant 0 : index
    %52 = vector.load %arg12[%c0_34, %c0_35] : memref<1x128xf32, #tpu.memory_space<vmem>>, vector<1x128xf32>
    %53 = vector.broadcast %52 : vector<1x128xf32> to vector<2x128xf32>
    %54 = arith.addf %51, %53 : vector<2x128xf32>
    %55 = vector.extract_strided_slice %54 {offsets = [0, 0], sizes = [2, 32], strides = [1, 1]} : vector<2x128xf32> to vector<2x32xf32>
    %56 = arith.negf %55 : vector<2x32xf32>
    %57 = math.exp %56 : vector<2x32xf32>
    %cst_36 = arith.constant 1.000000e+00 : f32
    %58 = vector.broadcast %cst_36 : f32 to vector<2x32xf32>
    %59 = arith.addf %58, %57 : vector<2x32xf32>
    %60 = arith.divf %58, %59 : vector<2x32xf32>
    %61 = vector.extract_strided_slice %54 {offsets = [0, 32], sizes = [2, 32], strides = [1, 1]} : vector<2x128xf32> to vector<2x32xf32>
    %62 = arith.negf %61 : vector<2x32xf32>
    %63 = math.exp %62 : vector<2x32xf32>
    %cst_37 = arith.constant 1.000000e+00 : f32
    %64 = vector.broadcast %cst_37 : f32 to vector<2x32xf32>
    %65 = arith.addf %64, %63 : vector<2x32xf32>
    %66 = arith.divf %64, %65 : vector<2x32xf32>
    %67 = vector.extract_strided_slice %54 {offsets = [0, 64], sizes = [2, 32], strides = [1, 1]} : vector<2x128xf32> to vector<2x32xf32>
    %68 = math.tanh %67 : vector<2x32xf32>
    %69 = vector.extract_strided_slice %54 {offsets = [0, 96], sizes = [2, 32], strides = [1, 1]} : vector<2x128xf32> to vector<2x32xf32>
    %70 = arith.negf %69 : vector<2x32xf32>
    %71 = math.exp %70 : vector<2x32xf32>
    %cst_38 = arith.constant 1.000000e+00 : f32
    %72 = vector.broadcast %cst_38 : f32 to vector<2x32xf32>
    %73 = arith.addf %72, %71 : vector<2x32xf32>
    %74 = arith.divf %72, %73 : vector<2x32xf32>
    %75 = arith.mulf %66, %6 : vector<2x32xf32>
    %76 = arith.mulf %60, %68 : vector<2x32xf32>
    %77 = arith.addf %75, %76 : vector<2x32xf32>
    %78 = math.tanh %77 : vector<2x32xf32>
    %79 = arith.mulf %74, %78 : vector<2x32xf32>
    %c0_39 = arith.constant 0 : index
    %c0_40 = arith.constant 0 : index
    %80 = vector.load %arg17[%c0_39, %c0_40] : memref<2x32xf32, #tpu.memory_space<vmem>>, vector<2x32xf32>
    tpu.vector_store %arg17[%c0_39, %c0_40], %79 {strides = array<i32>} : memref<2x32xf32, #tpu.memory_space<vmem>>, vector<2x32xf32>,
    %c0_41 = arith.constant 0 : index
    %c0_42 = arith.constant 0 : index
    %81 = vector.load %arg18[%c0_41, %c0_42] : memref<2x32xf32, #tpu.memory_space<vmem>>, vector<2x32xf32>
    tpu.vector_store %arg18[%c0_41, %c0_42], %77 {strides = array<i32>} : memref<2x32xf32, #tpu.memory_space<vmem>>, vector<2x32xf32>,
    %c0_43 = arith.constant 0 : index
    %c0_44 = arith.constant 0 : index
    %82 = vector.load %arg13[%c0_43, %c0_44] : memref<32x128xf32, #tpu.memory_space<vmem>>, vector<32x128xf32>
    %cst_45 = arith.constant dense<0.000000e+00> : vector<2x128xf32>
    %83 = tpu.matmul %79, %82, %cst_45 {dimension_numbers = #tpu.dot_dimension_numbers<[1], [0], [0], [1], [0, 0, 1, 1], [], []>} : vector<2x32xf32>, vector<32x128xf32>, vector<2x128xf32> -> vector<2x128xf32>
    %c0_46 = arith.constant 0 : index
    %c0_47 = arith.constant 0 : index
    %84 = vector.load %arg14[%c0_46, %c0_47] : memref<1x128xf32, #tpu.memory_space<vmem>>, vector<1x128xf32>
    %85 = vector.broadcast %84 : vector<1x128xf32> to vector<2x128xf32>
    %86 = arith.addf %83, %85 : vector<2x128xf32>
    %c0_48 = arith.constant 0 : index
    %c0_49 = arith.constant 0 : index
    %c0_50 = arith.constant 0 : index
    %87 = vector.load %arg15[%c0_48, %c0_49, %c0_50] : memref<1x2x128xf32, #tpu.memory_space<vmem>>, vector<1x2x128xf32>
    %88 = vector.shape_cast %87 : vector<1x2x128xf32> to vector<2x128xf32>
    %89 = vector.shape_cast %86 : vector<2x128xf32> to vector<1x2x128xf32>
    tpu.vector_store %arg15[%c0_48, %c0_49, %c0_50], %89 {strides = array<i32>} : memref<1x2x128xf32, #tpu.memory_space<vmem>>, vector<1x2x128xf32>,
    return
  }
  func.func @transform_0(%arg0: i32) -> (i32, i32, i32) {
    %c0_i32 = arith.constant 0 : i32
    %c0_i32_0 = arith.constant 0 : i32
    %c0_i32_1 = arith.constant 0 : i32
    return %arg0, %c0_i32, %c0_i32_0 : i32, i32, i32
  }
  func.func @transform_1(%arg0: i32) -> (i32, i32) {
    %c0_i32 = arith.constant 0 : i32
    %c0_i32_0 = arith.constant 0 : i32
    %c0_i32_1 = arith.constant 0 : i32
    return %c0_i32, %c0_i32_0 : i32, i32
  }
  func.func @transform_2(%arg0: i32) -> (i32, i32) {
    %c0_i32 = arith.constant 0 : i32
    %c0_i32_0 = arith.constant 0 : i32
    %c0_i32_1 = arith.constant 0 : i32
    return %c0_i32, %c0_i32_0 : i32, i32
  }
  func.func @transform_3(%arg0: i32) -> (i32, i32) {
    %c0_i32 = arith.constant 0 : i32
    %c0_i32_0 = arith.constant 0 : i32
    %c0_i32_1 = arith.constant 0 : i32
    return %c0_i32, %c0_i32_0 : i32, i32
  }
  func.func @transform_4(%arg0: i32) -> (i32, i32) {
    %c0_i32 = arith.constant 0 : i32
    %c0_i32_0 = arith.constant 0 : i32
    %c0_i32_1 = arith.constant 0 : i32
    return %c0_i32, %c0_i32_0 : i32, i32
  }
  func.func @transform_5(%arg0: i32) -> (i32, i32) {
    %c0_i32 = arith.constant 0 : i32
    %c0_i32_0 = arith.constant 0 : i32
    %c0_i32_1 = arith.constant 0 : i32
    return %c0_i32, %c0_i32_0 : i32, i32
  }
  func.func @transform_6(%arg0: i32) -> (i32, i32) {
    %c0_i32 = arith.constant 0 : i32
    %c0_i32_0 = arith.constant 0 : i32
    %c0_i32_1 = arith.constant 0 : i32
    return %c0_i32, %c0_i32_0 : i32, i32
  }
  func.func @transform_7(%arg0: i32) -> (i32, i32) {
    %c0_i32 = arith.constant 0 : i32
    %c0_i32_0 = arith.constant 0 : i32
    %c0_i32_1 = arith.constant 0 : i32
    return %c0_i32, %c0_i32_0 : i32, i32
  }
  func.func @transform_8(%arg0: i32) -> (i32, i32) {
    %c0_i32 = arith.constant 0 : i32
    %c0_i32_0 = arith.constant 0 : i32
    %c0_i32_1 = arith.constant 0 : i32
    return %c0_i32, %c0_i32_0 : i32, i32
  }
  func.func @transform_9(%arg0: i32) -> (i32, i32) {
    %c0_i32 = arith.constant 0 : i32
    %c0_i32_0 = arith.constant 0 : i32
    %c0_i32_1 = arith.constant 0 : i32
    return %c0_i32, %c0_i32_0 : i32, i32
  }
  func.func @transform_10(%arg0: i32) -> (i32, i32) {
    %c0_i32 = arith.constant 0 : i32
    %c0_i32_0 = arith.constant 0 : i32
    %c0_i32_1 = arith.constant 0 : i32
    return %c0_i32, %c0_i32_0 : i32, i32
  }
  func.func @transform_11(%arg0: i32) -> (i32, i32) {
    %c0_i32 = arith.constant 0 : i32
    %c0_i32_0 = arith.constant 0 : i32
    %c0_i32_1 = arith.constant 0 : i32
    return %c0_i32, %c0_i32_0 : i32, i32
  }
  func.func @transform_12(%arg0: i32) -> (i32, i32) {
    %c0_i32 = arith.constant 0 : i32
    %c0_i32_0 = arith.constant 0 : i32
    %c0_i32_1 = arith.constant 0 : i32
    return %c0_i32, %c0_i32_0 : i32, i32
  }
  func.func @transform_13(%arg0: i32) -> (i32, i32) {
    %c0_i32 = arith.constant 0 : i32
    %c0_i32_0 = arith.constant 0 : i32
    %c0_i32_1 = arith.constant 0 : i32
    return %c0_i32, %c0_i32_0 : i32, i32
  }
  func.func @transform_14(%arg0: i32) -> (i32, i32, i32) {
    %c0_i32 = arith.constant 0 : i32
    %c0_i32_0 = arith.constant 0 : i32
    %c0_i32_1 = arith.constant 0 : i32
    return %arg0, %c0_i32, %c0_i32_0 : i32, i32, i32
  }
  func.func @transform_15(%arg0: i32) -> (i32, i32, i32) {
    %c0_i32 = arith.constant 0 : i32
    %c0_i32_0 = arith.constant 0 : i32
    %c0_i32_1 = arith.constant 0 : i32
    return %arg0, %c0_i32, %c0_i32_0 : i32, i32, i32
  }
  func.func @transform_16(%arg0: i32) -> (i32, i32) {
    %c0_i32 = arith.constant 0 : i32
    %c0_i32_0 = arith.constant 0 : i32
    %c0_i32_1 = arith.constant 0 : i32
    return %c0_i32, %c0_i32_0 : i32, i32
  }
  func.func @transform_17(%arg0: i32) -> (i32, i32) {
    %c0_i32 = arith.constant 0 : i32
    %c0_i32_0 = arith.constant 0 : i32
    %c0_i32_1 = arith.constant 0 : i32
    return %c0_i32, %c0_i32_0 : i32, i32
  }
}

</mosaic_0001>

<llo_original>
// kernel: double_vocab_decode.1
$region0: #{double_vocab_decode.1}
  #allocation0 [shape = 'u32[]', space=smem, size = 0x4, offset = 0x4, fixed_abs, tag = 'smem constant byte address 0x4 - core index']
  #allocation1 [shape = 'u32[144,128]{1,0:T(1,128)}', space=vmem, size = 0x12000, scoped, tag = 'internal scratch']
  %s0 = inlined_call_operand.vmem [shape: f32[1,2,16], index: 0, kind: input, shape index: {}]
  %s1 = inlined_call_operand.vmem [shape: f32[2,32], index: 1, kind: input, shape index: {}]
  %s2 = inlined_call_operand.hbm [shape: f32[2,32], index: 2, kind: input, shape index: {}]
  %s3 = inlined_call_operand.vmem [shape: f32[16,64], index: 3, kind: input, shape index: {}]
  %s4 = inlined_call_operand.vmem [shape: f32[32,32], index: 4, kind: input, shape index: {}]
  %s5 = inlined_call_operand.vmem [shape: f32[64,32], index: 5, kind: input, shape index: {}]
  %s6 = inlined_call_operand.vmem [shape: f32[1,32], index: 6, kind: input, shape index: {}]
  %s7 = inlined_call_operand.vmem [shape: f32[1,32], index: 7, kind: input, shape index: {}]
  %s8 = inlined_call_operand.vmem [shape: f32[16,128], index: 8, kind: input, shape index: {}]
  %s9 = inlined_call_operand.vmem [shape: f32[64,128], index: 9, kind: input, shape index: {}]
  %s10 = inlined_call_operand.vmem [shape: f32[32,128], index: 10, kind: input, shape index: {}]
  %s11 = inlined_call_operand.hbm [shape: f32[1,128], index: 11, kind: input, shape index: {}]
  %s12 = inlined_call_operand.vmem [shape: f32[32,128], index: 12, kind: input, shape index: {}]
  %s13 = inlined_call_operand.vmem [shape: f32[1,128], index: 13, kind: input, shape index: {}]
  %s14 = inlined_call_operand.hbm [shape: f32[1,2,128], index: 14, kind: output, shape index: {0}]
  %s15 = inlined_call_operand.hbm [shape: f32[1,2,8], index: 15, kind: output, shape index: {1}]
  %s16 = inlined_call_operand.hbm [shape: f32[2,32], index: 16, kind: output, shape index: {2}]
  %s17 = inlined_call_operand.hbm [shape: f32[2,32], index: 17, kind: output, shape index: {3}]
  %18 = xla_tuple %s14, %s15, %s16, %s17
  %s19 = sld [smem:[#allocation0]]
  $region102: #{double_vocab_decode.1} parent=0
    _
  %s21 = ssub.s32 1, %s19
  %s22 = scalar_select 0, %s21, %s19
  $region1: #{double_vocab_decode.1} parent=0
    #allocation2 [shape = 'u8[1024]{0}', space=vmem, size = 0x400, scoped, tag = 'input window, operand 2, single buffered']
    #allocation3 [shape = 's32[1]{0}', space=sflag, size = 0x4, scoped, tag = 'scoped memory for double_vocab_decode.1']
    #allocation4 [shape = 's32[1]{0}', space=sflag, size = 0x4, scoped, tag = 'scoped memory for double_vocab_decode.1']
    #allocation5 [shape = 'u8[512]{0}', space=vmem, size = 0x400, scoped, tag = 'input window, operand 11, single buffered']
    #allocation6 [shape = 's32[1]{0}', space=sflag, size = 0x4, scoped, tag = 'scoped memory for double_vocab_decode.1']
    #allocation7 [shape = 'u8[1024]{0}', space=vmem, size = 0x400, scoped, tag = 'output window, operand 0, single buffered']
    #allocation8 [shape = 'u8[1024]{0}', space=vmem, size = 0x400, scoped, tag = 'output window, operand 1, single buffered']
    #allocation9 [shape = 's32[1]{0}', space=sflag, size = 0x4, scoped, tag = 'scoped memory for double_vocab_decode.1']
    #allocation10 [shape = 'u8[1024]{0}', space=vmem, size = 0x400, scoped, tag = 'output window, operand 2, single buffered']
    #allocation11 [shape = 'u8[1024]{0}', space=vmem, size = 0x400, scoped, tag = 'output window, operand 3, single buffered']
    #allocation12 [shape = 's32[1]{0}', space=sflag, size = 0x4, scoped, tag = 'scoped memory for double_vocab_decode.1']
    %23 = vsyncpa [#allocation3], 0
    %24 = vsyncpa [#allocation6], 0
    %25 = vsyncpa [#allocation4], 0
    %26 = vsyncpa [#allocation9], 0
    %27 = vsyncpa [#allocation12], 0
    // Predicated region
    $region2: #{double_vocab_decode.1} parent=1 // pred_check
      _
    $region3: #{double_vocab_decode.1} parent=1 // pred_check_branch
      %29 = sbr.rel (0) target = $region5
    $region4: #{double_vocab_decode.1} parent=1 // pred_region
      _
    $region5: #{double_vocab_decode.1} parent=1 // pred_fallthru
      _
    // Predicated region
    $region6: #{double_vocab_decode.1} parent=1 // pred_check
      _
    $region7: #{double_vocab_decode.1} parent=1 // pred_check_branch
      %31 = sbr.rel (0) target = $region9
    $region8: #{double_vocab_decode.1} parent=1 // pred_region
      _
    $region9: #{double_vocab_decode.1} parent=1 // pred_fallthru
      _
    // Predicated region
    $region10: #{double_vocab_decode.1} parent=1 // pred_check
      _
    $region11: #{double_vocab_decode.1} parent=1 // pred_check_branch
      %33 = sbr.rel (0) target = $region13
    $region12: #{double_vocab_decode.1} parent=1 // pred_region
      %s35 = ssub.s32 32, 32
      %36 = vsyncadd [#allocation3], %s35
      %s38 = sshll.u32 [#allocation2], 4
      %s39 = int_to_ptr.vmem [resolvable:$true] %s38
      %41 = dma.hbm_to_vmem [thread:$0]  %s2, 32, %s39, [#allocation3]
    $region13: #{double_vocab_decode.1} parent=1 // pred_fallthru
      _
    // Predicated region
    $region14: #{double_vocab_decode.1} parent=1 // pred_check
      _
    $region15: #{double_vocab_decode.1} parent=1 // pred_check_branch
      %43 = sbr.rel (0) target = $region17
    $region16: #{double_vocab_decode.1} parent=1 // pred_region
      _
    $region17: #{double_vocab_decode.1} parent=1 // pred_fallthru
      _
    // Predicated region
    $region18: #{double_vocab_decode.1} parent=1 // pred_check
      _
    $region19: #{double_vocab_decode.1} parent=1 // pred_check_branch
      %45 = sbr.rel (0) target = $region21
    $region20: #{double_vocab_decode.1} parent=1 // pred_region
      _
    $region21: #{double_vocab_decode.1} parent=1 // pred_fallthru
      _
    // Predicated region
    $region22: #{double_vocab_decode.1} parent=1 // pred_check
      _
    $region23: #{double_vocab_decode.1} parent=1 // pred_check_branch
      %47 = sbr.rel (0) target = $region25
    $region24: #{double_vocab_decode.1} parent=1 // pred_region
      _
    $region25: #{double_vocab_decode.1} parent=1 // pred_fallthru
      _
    // Predicated region
    $region26: #{double_vocab_decode.1} parent=1 // pred_check
      _
    $region27: #{double_vocab_decode.1} parent=1 // pred_check_branch
      %49 = sbr.rel (0) target = $region29
    $region28: #{double_vocab_decode.1} parent=1 // pred_region
      _
    $region29: #{double_vocab_decode.1} parent=1 // pred_fallthru
      _
    // Predicated region
    $region30: #{double_vocab_decode.1} parent=1 // pred_check
      _
    $region31: #{double_vocab_decode.1} parent=1 // pred_check_branch
      %51 = sbr.rel (0) target = $region33
    $region32: #{double_vocab_decode.1} parent=1 // pred_region
      _
    $region33: #{double_vocab_decode.1} parent=1 // pred_fallthru
      _
    // Predicated region
    $region34: #{double_vocab_decode.1} parent=1 // pred_check
      _
    $region35: #{double_vocab_decode.1} parent=1 // pred_check_branch
      %53 = sbr.rel (0) target = $region37
    $region36: #{double_vocab_decode.1} parent=1 // pred_region
      _
    $region37: #{double_vocab_decode.1} parent=1 // pred_fallthru
      _
    // Predicated region
    $region38: #{double_vocab_decode.1} parent=1 // pred_check
      _
    $region39: #{double_vocab_decode.1} parent=1 // pred_check_branch
      %55 = sbr.rel (0) target = $region41
    $region40: #{double_vocab_decode.1} parent=1 // pred_region
      _
    $region41: #{double_vocab_decode.1} parent=1 // pred_fallthru
      _
    // Predicated region
    $region42: #{double_vocab_decode.1} parent=1 // pred_check
      _
    $region43: #{double_vocab_decode.1} parent=1 // pred_check_branch
      %57 = sbr.rel (0) target = $region45
    $region44: #{double_vocab_decode.1} parent=1 // pred_region
      _
    $region45: #{double_vocab_decode.1} parent=1 // pred_fallthru
      _
    // Predicated region
    $region46: #{double_vocab_decode.1} parent=1 // pred_check
      _
    $region47: #{double_vocab_decode.1} parent=1 // pred_check_branch
      %59 = sbr.rel (0) target = $region49
    $region48: #{double_vocab_decode.1} parent=1 // pred_region
      %s61 = ssub.s32 16, 16
      %62 = vsyncadd [#allocation6], %s61
      %s64 = sshll.u32 [#allocation5], 4
      %s65 = int_to_ptr.vmem [resolvable:$true] %s64
      %67 = dma.hbm_to_vmem [thread:$0]  %s11, 16, %s65, [#allocation6]
    $region49: #{double_vocab_decode.1} parent=1 // pred_fallthru
      _
    // Predicated region
    $region50: #{double_vocab_decode.1} parent=1 // pred_check
      _
    $region51: #{double_vocab_decode.1} parent=1 // pred_check_branch
      %69 = sbr.rel (0) target = $region53
    $region52: #{double_vocab_decode.1} parent=1 // pred_region
      _
    $region53: #{double_vocab_decode.1} parent=1 // pred_fallthru
      _
    // Predicated region
    $region54: #{double_vocab_decode.1} parent=1 // pred_check
      _
    $region55: #{double_vocab_decode.1} parent=1 // pred_check_branch
      %71 = sbr.rel (0) target = $region57
    $region56: #{double_vocab_decode.1} parent=1 // pred_region
      _
    $region57: #{double_vocab_decode.1} parent=1 // pred_fallthru
      _
    // Predicated region
    $region58: #{double_vocab_decode.1} parent=1 // pred_check
      _
    $region59: #{double_vocab_decode.1} parent=1 // pred_check_branch
      %73 = sbr.rel (0) target = $region61
    $region60: #{double_vocab_decode.1} parent=1 // pred_region
      %74 = dma.done [#allocation3], 32
    $region61: #{double_vocab_decode.1} parent=1 // pred_fallthru
      _
    // Predicated region
    $region62: #{double_vocab_decode.1} parent=1 // pred_check
      _
    $region63: #{double_vocab_decode.1} parent=1 // pred_check_branch
      %76 = sbr.rel (0) target = $region65
    $region64: #{double_vocab_decode.1} parent=1 // pred_region
      %77 = dma.done [#allocation6], 16
    $region65: #{double_vocab_decode.1} parent=1 // pred_fallthru
      _
    %p78 = scmp.eq.s32.totalorder 0, 0
    // Predicated region
    $region66: #{double_vocab_decode.1} parent=1 // pred_check
      %p79 = pneg %p78
    $region67: #{double_vocab_decode.1} parent=1 // pred_check_branch
      %81 = sbr.rel (%p79) target = $region69
    $region68: #{double_vocab_decode.1} parent=1 // pred_region
      %v82 = vld [vmem:[%s1] sm:$0x3]
      %vm83 = vcmask 254976
      %84 = vst.msk [vmem:[#allocation10] sm:$0x3] %vm83, %v82
      %v85 = vld [vmem:[#allocation2] sm:$0x3]
      %86 = vst.msk [vmem:[#allocation11] sm:$0x3] %vm83, %v85
    $region69: #{double_vocab_decode.1} parent=1 // pred_fallthru
      _
    %v87 = vld [vmem:[%s0] sm:$0x3]
    %v88 = vld [vmem:[#allocation10] sm:$0x3]
    %v89 = vld [vmem:[#allocation11] sm:$0x3]
    %v90 = vld [vmem:[%s3] sm:$0xff]
    %v91 = vld [vmem:[%s3 + $0x8] sm:$0xff]
    %v92 = vld [vmem:[%s4] sm:$0xff]
    %v93 = vld [vmem:[%s4 + $0x8] sm:$0xff]
    %v94 = vld [vmem:[%s4 + $0x10] sm:$0xff]
    %v95 = vld [vmem:[%s4 + $0x18] sm:$0xff]
    %vm96 = vcmask 261120
    %v98 = vsel %vm96, %v88, 0
    %100 = vmatprep.subr.mxu0 0.0
    %101 = vmatpush1.msra.mxu0 %v92
    %102 = vmatprep.subr.mxu0 0.0
    %103 = vmatpush1.msra.mxu0 %v93
    %104 = vmatprep.subr.mxu0 0.0
    %105 = vmatpush1.msra.mxu0 %v94
    %106 = vmatprep.subr.mxu0 0.0
    %107 = vmatpush1.msra.mxu0 %v95
    %108 = vmatprep.subr.mxu0 0.0
    %109 = vmatpush1.msra.mxu0 0.0
    %110 = vmatprep.subr.mxu0 0.0
    %111 = vmatpush1.msra.mxu0 0.0
    %112 = vmatprep.subr.mxu0 0.0
    %113 = vmatpush1.msra.mxu0 0.0
    %114 = vmatprep.subr.mxu0 0.0
    %115 = vmatpush1.msra.mxu0 0.0
    %116 = vmatprep.subr.mxu0 0.0
    %117 = vmatpush1.msra.mxu0 0.0
    %118 = vmatprep.subr.mxu0 0.0
    %119 = vmatpush1.msra.mxu0 0.0
    %120 = vmatprep.subr.mxu0 0.0
    %121 = vmatpush1.msra.mxu0 0.0
    %122 = vmatprep.subr.mxu0 0.0
    %123 = vmatpush1.msra.mxu0 0.0
    %124 = vmatprep.subr.mxu0 0.0
    %125 = vmatpush1.msra.mxu0 0.0
    %126 = vmatprep.subr.mxu0 0.0
    %127 = vmatpush1.msra.mxu0 0.0
    %128 = vmatprep.subr.mxu0 0.0
    %129 = vmatpush1.msra.mxu0 0.0
    %130 = vmatprep.subr.mxu0 0.0
    %131 = vmatpush1.msra.mxu0 0.0
    %132 = vmatprep.subr.mxu0 0.0
    %133 = vmatpush1.msra.mxu0 0.0
    %134 = vmatprep.subr.mxu0 0.0
    %135 = vmatpush1.msra.mxu0 0.0
    %136 = vmatprep.subr.mxu0 0.0
    %137 = vmatpush1.msra.mxu0 0.0
    %138 = vmatprep.subr.mxu0 0.0
    %139 = vmatpush1.msra.mxu0 0.0
    %140 = vmatprep.subr.mxu0 0.0
    %141 = vmatpush1.msra.mxu0 0.0
    %142 = vmatprep.subr.mxu0 0.0
    %143 = vmatpush1.msra.mxu0 0.0
    %144 = vmatprep.subr.mxu0 0.0
    %145 = vmatpush1.msra.mxu0 0.0
    %146 = vmatprep.subr.mxu0 0.0
    %147 = vmatpush1.msra.mxu0 0.0
    %148 = vmatprep.subr.mxu0 0.0
    %149 = vmatpush1.msra.mxu0 0.0
    %150 = vmatprep.subr.mxu0 0.0
    %151 = vmatpush1.msra.mxu0 0.0
    %152 = vmatprep.subr.mxu0 0.0
    %153 = vmatpush1.msra.mxu0 0.0
    %154 = vmatprep.subr.mxu0 0.0
    %155 = vmatpush1.msra.mxu0 0.0
    %156 = vmatprep.subr.mxu0 0.0
    %157 = vmatpush1.msra.mxu0 0.0
    %158 = vmatprep.subr.mxu0 0.0
    %159 = vmatpush1.msra.mxu0 0.0
    %160 = vmatprep.subr.mxu0 0.0
    %161 = vmatpush1.msra.mxu0 0.0
    %162 = vmatprep.subr.mxu0 0.0
    %163 = vmatpush1.msra.mxu0 0.0
    %164 = vmatprep.mubr.f32.mxu0 0.0
    %165 = vmatmul.mubr.f32.gmra.mrb[0].mxu0 %v98
    %v166 = vpop.f32.mrb[0].mxu0
    %v167 = vadd.f32 0.0, %v166
    %v168 = vpop.f32.mrb[0].mxu0
    %169 = vdwg.mxu0
    %v170 = vld [vmem:[%s5] sm:$0xff]
    %v171 = vld [vmem:[%s5 + $0x8] sm:$0xff]
    %v172 = vld [vmem:[%s5 + $0x10] sm:$0xff]
    %v173 = vld [vmem:[%s5 + $0x18] sm:$0xff]
    %v174 = vld [vmem:[%s5 + $0x20] sm:$0xff]
    %v175 = vld [vmem:[%s5 + $0x28] sm:$0xff]
    %v176 = vld [vmem:[%s5 + $0x30] sm:$0xff]
    %v177 = vld [vmem:[%s5 + $0x38] sm:$0xff]
    %vm178 = vcmask 523264
    %v180 = vsel %vm178, %v90, 0
    %v183 = vsel %vm178, %v91, 0
    %185 = vmatprep.subr.mxu0 0.0
    %186 = vmatpush1.msra.mxu0 %v170
    %187 = vmatprep.subr.mxu0 0.0
    %188 = vmatpush1.msra.mxu0 %v171
    %189 = vmatprep.subr.mxu0 0.0
    %190 = vmatpush1.msra.mxu0 %v172
    %191 = vmatprep.subr.mxu0 0.0
    %192 = vmatpush1.msra.mxu0 %v173
    %193 = vmatprep.subr.mxu0 0.0
    %194 = vmatpush1.msra.mxu0 %v174
    %195 = vmatprep.subr.mxu0 0.0
    %196 = vmatpush1.msra.mxu0 %v175
    %197 = vmatprep.subr.mxu0 0.0
    %198 = vmatpush1.msra.mxu0 %v176
    %199 = vmatprep.subr.mxu0 0.0
    %200 = vmatpush1.msra.mxu0 %v177
    %201 = vmatprep.subr.mxu0 0.0
    %202 = vmatpush1.msra.mxu0 0.0
    %203 = vmatprep.subr.mxu0 0.0
    %204 = vmatpush1.msra.mxu0 0.0
    %205 = vmatprep.subr.mxu0 0.0
    %206 = vmatpush1.msra.mxu0 0.0
    %207 = vmatprep.subr.mxu0 0.0
    %208 = vmatpush1.msra.mxu0 0.0
    %209 = vmatprep.subr.mxu0 0.0
    %210 = vmatpush1.msra.mxu0 0.0
    %211 = vmatprep.subr.mxu0 0.0
    %212 = vmatpush1.msra.mxu0 0.0
    %213 = vmatprep.subr.mxu0 0.0
    %214 = vmatpush1.msra.mxu0 0.0
    %215 = vmatprep.subr.mxu0 0.0
    %216 = vmatpush1.msra.mxu0 0.0
    %217 = vmatprep.subr.mxu0 0.0
    %218 = vmatpush1.msra.mxu0 0.0
    %219 = vmatprep.subr.mxu0 0.0
    %220 = vmatpush1.msra.mxu0 0.0
    %221 = vmatprep.subr.mxu0 0.0
    %222 = vmatpush1.msra.mxu0 0.0
    %223 = vmatprep.subr.mxu0 0.0
    %224 = vmatpush1.msra.mxu0 0.0
    %225 = vmatprep.subr.mxu0 0.0
    %226 = vmatpush1.msra.mxu0 0.0
    %227 = vmatprep.subr.mxu0 0.0
    %228 = vmatpush1.msra.mxu0 0.0
    %229 = vmatprep.subr.mxu0 0.0
    %230 = vmatpush1.msra.mxu0 0.0
    %231 = vmatprep.subr.mxu0 0.0
    %232 = vmatpush1.msra.mxu0 0.0
    %233 = vmatprep.subr.mxu0 0.0
    %234 = vmatpush1.msra.mxu0 0.0
    %235 = vmatprep.subr.mxu0 0.0
    %236 = vmatpush1.msra.mxu0 0.0
    %237 = vmatprep.subr.mxu0 0.0
    %238 = vmatpush1.msra.mxu0 0.0
    %239 = vmatprep.subr.mxu0 0.0
    %240 = vmatpush1.msra.mxu0 0.0
    %241 = vmatprep.subr.mxu0 0.0
    %242 = vmatpush1.msra.mxu0 0.0
    %243 = vmatprep.subr.mxu0 0.0
    %244 = vmatpush1.msra.mxu0 0.0
    %245 = vmatprep.subr.mxu0 0.0
    %246 = vmatpush1.msra.mxu0 0.0
    %247 = vmatprep.subr.mxu0 0.0
    %248 = vmatpush1.msra.mxu0 0.0
    %249 = vmatprep.mubr.f32.mxu0 0.0
    %250 = vmatmul.mubr.f32.gmra.mrb[0].mxu0 %v180
    %v251 = vpop.f32.mrb[0].mxu0
    %v252 = vadd.f32 0.0, %v251
    %v253 = vpop.f32.mrb[0].mxu0
    %254 = vmatprep.mubr.f32.mxu0 0.0
    %255 = vmatmul.mubr.f32.gmra.mrb[0].mxu0 %v183
    %v256 = vpop.f32.mrb[0].mxu0
    %v257 = vadd.f32 0.0, %v256
    %v258 = vpop.f32.mrb[0].mxu0
    %259 = vdwg.mxu0
    %v262 = vunpack.c.l.s4 1966171168
    %v263 = vunpack.c.0.s8 %v262
    %v264 = vlaneseq
    %v265 = vshrl.u32 %v264, 7
    %v266 = vsub.s32 %v263, %v265
    %v267 = vrot.slane %v167, %v266
    %v268 = vcombine.high %v267, %v267
    %v270 = vunpack.c.l.s4 1966171168
    %v271 = vunpack.c.0.s8 %v270
    %v272 = vlaneseq
    %v273 = vshrl.u32 %v272, 7
    %v274 = vsub.s32 %v271, %v273
    %v275 = vrot.slane %v267, %v274
    %v277 = vunpack.c.l.s4 1966171168
    %v278 = vunpack.c.0.s8 %v277
    %v279 = vlaneseq
    %v280 = vshrl.u32 %v279, 7
    %v281 = vsub.s32 %v278, %v280
    %v282 = vrot.slane %v268, %v281
    %v283 = vlaneseq
    %v284 = vshrl.u32 %v283, 7
    %v285 = vsub.s32 0, %v284
    %v286 = vrot.slane %v275, %v285
    %v287 = vlaneseq
    %v288 = vshrl.u32 %v287, 7
    %v289 = vsub.s32 0, %v288
    %v290 = vrot.slane %v282, %v289
    %v293 = vadd.f32 %v252, %v286
    %v294 = vadd.f32 %v257, %v290
    %v295 = vld [vmem:[%s6] sm:$0x1]
    %v297 = vlaneseq
    %v298 = vshrl.u32 %v297, 7
    %v299 = vsub.s32 0, %v298
    %v300 = vrot.slane %v295, %v299
    %v302 = vadd.f32 %v293, %v300
    %v303 = vadd.f32 %v294, %v300
    %v304 = vtanh.pop %v302
    %v305 = vtanh.pop %v303
    %v306 = vld [vmem:[%s7] sm:$0x1]
    %v308 = vlaneseq
    %v309 = vshrl.u32 %v308, 7
    %v310 = vsub.s32 0, %v309
    %v311 = vrot.slane %v306, %v310
    %v313 = vmul.f32 %v304, %v311
    %v314 = vmul.f32 %v305, %v311
    %v315 = vsel %vm96, %v313, 0.0
    %316 = vadd.xlane.f32.xlu0 %v315
    %v317 = vpop.xlane.xlu0 %316
    %v318 = vsel %vm96, %v314, 0.0
    %319 = vadd.xlane.f32.xlu0 %v318
    %v320 = vpop.xlane.xlu0 %319
    %v323 = vlaneseq
    %v324 = vand.u32 %v323, 127
    %v325 = vlaneseq
    %v326 = vshrl.u32 %v325, 7
    %v327 = vsub.s32 %v324, %v326
    %v328 = vrot.slane %v317, %v327
    %v329 = vlaneseq
    %v330 = vshrl.u32 %v329, 7
    %v331 = vsub.s32 %v324, %v330
    %v332 = vrot.slane %v320, %v331
    %vm333 = vcmask 1041409
    %v334 = vsel %vm333, %v332, %v328
    %vm336 = vcmask 58368
    %v337 = vsel %vm336, %v334, -inf
    %338 = vmax.xlane.f32.xlu0 %v337
    %v339 = vpop.xlane.xlu0 %338
    %v341 = vlaneseq
    %v342 = vshrl.u32 %v341, 7
    %v343 = vsub.s32 0, %v342
    %v344 = vrot.slane %v339, %v343
    %v345 = vlaneseq
    %v346 = vshrl.u32 %v345, 7
    %v347 = vsub.s32 1, %v346
    %v348 = vrot.slane %v339, %v347
    %v351 = vsub.f32 %v317, %v344
    %v352 = vsub.f32 %v320, %v348
    %v353 = vmul.f32 %v351, 1.442695
    %v354 = vpow.pop %v353
    %v355 = vmul.f32 %v352, 1.442695
    %v356 = vpow.pop %v355
    %359 = vset.pattern.permute.xlu0 0
    %360 = vperm.xlu0 %359, %v354
    %v361 = vpop.permute.xlu0 %360
    %362 = vset.pattern.permute.xlu0 0
    %363 = vperm.xlu0 %362, %v356
    %v364 = vpop.permute.xlu0 %363
    %v365 = vlaneseq
    %v366 = vshrl.u32 %v365, 7
    %v367 = vsub.s32 %v324, %v366
    %v368 = vrot.slane %v361, %v367
    %v369 = vlaneseq
    %v370 = vshrl.u32 %v369, 7
    %v371 = vsub.s32 %v324, %v370
    %v372 = vrot.slane %v364, %v371
    %v373 = vsel %vm333, %v372, %v368
    %v375 = vsel %vm336, %v373, 0.0
    %376 = vadd.xlane.f32.xlu0 %v375
    %v377 = vpop.xlane.xlu0 %376
    %v378 = vrcp.pop %v377
    %v380 = vlaneseq
    %v381 = vshrl.u32 %v380, 7
    %v382 = vsub.s32 0, %v381
    %v383 = vrot.slane %v378, %v382
    %v384 = vlaneseq
    %v385 = vshrl.u32 %v384, 7
    %v386 = vsub.s32 1, %v385
    %v387 = vrot.slane %v378, %v386
    %v390 = vmul.f32 %v354, %v383
    %v391 = vmul.f32 %v356, %v387
    %394 = vset.pattern.permute.xlu0 0
    %395 = vperm.xlu0 %394, %v390
    %v396 = vpop.permute.xlu0 %395
    %397 = vset.pattern.permute.xlu0 0
    %398 = vperm.xlu0 %397, %v391
    %v399 = vpop.permute.xlu0 %398
    %v400 = vlaneseq
    %v401 = vshrl.u32 %v400, 7
    %v402 = vsub.s32 %v324, %v401
    %v403 = vrot.slane %v396, %v402
    %v404 = vlaneseq
    %v405 = vshrl.u32 %v404, 7
    %v406 = vsub.s32 %v324, %v405
    %v407 = vrot.slane %v399, %v406
    %v408 = vsel %vm333, %v407, %v403
    %410 = vst.msk [vmem:[#allocation8] sm:$0x3] %vm336, %v408
    %v413 = vmul.f32 %v396, %v90
    %v414 = vmul.f32 %v399, %v91
    %v415 = vsel %vm178, %v413, 0.0
    %v416 = vrot.slane %v415, 4
    %v417 = vadd.f32 %v415, %v416
    %v418 = vrot.slane %v417, 2
    %v419 = vadd.f32 %v417, %v418
    %v420 = vrot.slane %v419, 1
    %v421 = vadd.f32 %v419, %v420
    %v422 = vsel %vm178, %v414, 0.0
    %v423 = vrot.slane %v422, 4
    %v424 = vadd.f32 %v422, %v423
    %v425 = vrot.slane %v424, 2
    %v426 = vadd.f32 %v424, %v425
    %v427 = vrot.slane %v426, 1
    %v428 = vadd.f32 %v426, %v427
    %v429 = vld [vmem:[%s8] sm:$0xff]
    %v430 = vld [vmem:[%s8 + $0x8] sm:$0xff]
    %v431 = vld [vmem:[%s9] sm:$0xff]
    %v432 = vld [vmem:[%s9 + $0x8] sm:$0xff]
    %v433 = vld [vmem:[%s9 + $0x10] sm:$0xff]
    %v434 = vld [vmem:[%s9 + $0x18] sm:$0xff]
    %v435 = vld [vmem:[%s9 + $0x20] sm:$0xff]
    %v436 = vld [vmem:[%s9 + $0x28] sm:$0xff]
    %v437 = vld [vmem:[%s9 + $0x30] sm:$0xff]
    %v438 = vld [vmem:[%s9 + $0x38] sm:$0xff]
    %v441 = vsel %vm333, %v428, %v421
    %v442 = vsel %vm178, %v441, 0
    %444 = vmatprep.subr.mxu0 0.0
    %445 = vmatpush1.msra.mxu0 %v431
    %446 = vmatprep.subr.mxu0 0.0
    %447 = vmatpush1.msra.mxu0 %v432
    %448 = vmatprep.subr.mxu0 0.0
    %449 = vmatpush1.msra.mxu0 %v433
    %450 = vmatprep.subr.mxu0 0.0
    %451 = vmatpush1.msra.mxu0 %v434
    %452 = vmatprep.subr.mxu0 0.0
    %453 = vmatpush1.msra.mxu0 %v435
    %454 = vmatprep.subr.mxu0 0.0
    %455 = vmatpush1.msra.mxu0 %v436
    %456 = vmatprep.subr.mxu0 0.0
    %457 = vmatpush1.msra.mxu0 %v437
    %458 = vmatprep.subr.mxu0 0.0
    %459 = vmatpush1.msra.mxu0 %v438
    %460 = vmatprep.subr.mxu0 0.0
    %461 = vmatpush1.msra.mxu0 0.0
    %462 = vmatprep.subr.mxu0 0.0
    %463 = vmatpush1.msra.mxu0 0.0
    %464 = vmatprep.subr.mxu0 0.0
    %465 = vmatpush1.msra.mxu0 0.0
    %466 = vmatprep.subr.mxu0 0.0
    %467 = vmatpush1.msra.mxu0 0.0
    %468 = vmatprep.subr.mxu0 0.0
    %469 = vmatpush1.msra.mxu0 0.0
    %470 = vmatprep.subr.mxu0 0.0
    %471 = vmatpush1.msra.mxu0 0.0
    %472 = vmatprep.subr.mxu0 0.0
    %473 = vmatpush1.msra.mxu0 0.0
    %474 = vmatprep.subr.mxu0 0.0
    %475 = vmatpush1.msra.mxu0 0.0
    %476 = vmatprep.subr.mxu0 0.0
    %477 = vmatpush1.msra.mxu0 0.0
    %478 = vmatprep.subr.mxu0 0.0
    %479 = vmatpush1.msra.mxu0 0.0
    %480 = vmatprep.subr.mxu0 0.0
    %481 = vmatpush1.msra.mxu0 0.0
    %482 = vmatprep.subr.mxu0 0.0
    %483 = vmatpush1.msra.mxu0 0.0
    %484 = vmatprep.subr.mxu0 0.0
    %485 = vmatpush1.msra.mxu0 0.0
    %486 = vmatprep.subr.mxu0 0.0
    %487 = vmatpush1.msra.mxu0 0.0
    %488 = vmatprep.subr.mxu0 0.0
    %489 = vmatpush1.msra.mxu0 0.0
    %490 = vmatprep.subr.mxu0 0.0
    %491 = vmatpush1.msra.mxu0 0.0
    %492 = vmatprep.subr.mxu0 0.0
    %493 = vmatpush1.msra.mxu0 0.0
    %494 = vmatprep.subr.mxu0 0.0
    %495 = vmatpush1.msra.mxu0 0.0
    %496 = vmatprep.subr.mxu0 0.0
    %497 = vmatpush1.msra.mxu0 0.0
    %498 = vmatprep.subr.mxu0 0.0
    %499 = vmatpush1.msra.mxu0 0.0
    %500 = vmatprep.subr.mxu0 0.0
    %501 = vmatpush1.msra.mxu0 0.0
    %502 = vmatprep.subr.mxu0 0.0
    %503 = vmatpush1.msra.mxu0 0.0
    %504 = vmatprep.subr.mxu0 0.0
    %505 = vmatpush1.msra.mxu0 0.0
    %506 = vmatprep.subr.mxu0 0.0
    %507 = vmatpush1.msra.mxu0 0.0
    %508 = vmatprep.mubr.f32.mxu0 0.0
    %509 = vmatmul.mubr.f32.gmra.mrb[0].mxu0 %v442
    %v510 = vpop.f32.mrb[0].mxu0
    %v511 = vadd.f32 0.0, %v510
    %v512 = vpop.f32.mrb[0].mxu0
    %513 = vdwg.mxu0
    %vm514 = vcmask 130048
    %v516 = vsel %vm514, %v87, 0
    %518 = vmatprep.subr.mxu0 0.0
    %519 = vmatpush1.msra.mxu0 %v429
    %520 = vmatprep.subr.mxu0 0.0
    %521 = vmatpush1.msra.mxu0 %v430
    %522 = vmatprep.subr.mxu0 0.0
    %523 = vmatpush1.msra.mxu0 0.0
    %524 = vmatprep.subr.mxu0 0.0
    %525 = vmatpush1.msra.mxu0 0.0
    %526 = vmatprep.subr.mxu0 0.0
    %527 = vmatpush1.msra.mxu0 0.0
    %528 = vmatprep.subr.mxu0 0.0
    %529 = vmatpush1.msra.mxu0 0.0
    %530 = vmatprep.subr.mxu0 0.0
    %531 = vmatpush1.msra.mxu0 0.0
    %532 = vmatprep.subr.mxu0 0.0
    %533 = vmatpush1.msra.mxu0 0.0
    %534 = vmatprep.subr.mxu0 0.0
    %535 = vmatpush1.msra.mxu0 0.0
    %536 = vmatprep.subr.mxu0 0.0
    %537 = vmatpush1.msra.mxu0 0.0
    %538 = vmatprep.subr.mxu0 0.0
    %539 = vmatpush1.msra.mxu0 0.0
    %540 = vmatprep.subr.mxu0 0.0
    %541 = vmatpush1.msra.mxu0 0.0
    %542 = vmatprep.subr.mxu0 0.0
    %543 = vmatpush1.msra.mxu0 0.0
    %544 = vmatprep.subr.mxu0 0.0
    %545 = vmatpush1.msra.mxu0 0.0
    %546 = vmatprep.subr.mxu0 0.0
    %547 = vmatpush1.msra.mxu0 0.0
    %548 = vmatprep.subr.mxu0 0.0
    %549 = vmatpush1.msra.mxu0 0.0
    %550 = vmatprep.subr.mxu0 0.0
    %551 = vmatpush1.msra.mxu0 0.0
    %552 = vmatprep.subr.mxu0 0.0
    %553 = vmatpush1.msra.mxu0 0.0
    %554 = vmatprep.subr.mxu0 0.0
    %555 = vmatpush1.msra.mxu0 0.0
    %556 = vmatprep.subr.mxu0 0.0
    %557 = vmatpush1.msra.mxu0 0.0
    %558 = vmatprep.subr.mxu0 0.0
    %559 = vmatpush1.msra.mxu0 0.0
    %560 = vmatprep.subr.mxu0 0.0
    %561 = vmatpush1.msra.mxu0 0.0
    %562 = vmatprep.subr.mxu0 0.0
    %563 = vmatpush1.msra.mxu0 0.0
    %564 = vmatprep.subr.mxu0 0.0
    %565 = vmatpush1.msra.mxu0 0.0
    %566 = vmatprep.subr.mxu0 0.0
    %567 = vmatpush1.msra.mxu0 0.0
    %568 = vmatprep.subr.mxu0 0.0
    %569 = vmatpush1.msra.mxu0 0.0
    %570 = vmatprep.subr.mxu0 0.0
    %571 = vmatpush1.msra.mxu0 0.0
    %572 = vmatprep.subr.mxu0 0.0
    %573 = vmatpush1.msra.mxu0 0.0
    %574 = vmatprep.subr.mxu0 0.0
    %575 = vmatpush1.msra.mxu0 0.0
    %576 = vmatprep.subr.mxu0 0.0
    %577 = vmatpush1.msra.mxu0 0.0
    %578 = vmatprep.subr.mxu0 0.0
    %579 = vmatpush1.msra.mxu0 0.0
    %580 = vmatprep.subr.mxu0 0.0
    %581 = vmatpush1.msra.mxu0 0.0
    %582 = vmatprep.mubr.f32.mxu0 0.0
    %583 = vmatmul.mubr.f32.gmra.mrb[0].mxu0 %v516
    %v584 = vpop.f32.mrb[0].mxu0
    %v585 = vadd.f32 %v511, %v584
    %v586 = vpop.f32.mrb[0].mxu0
    %587 = vdwg.mxu0
    %v588 = vld [vmem:[%s10] sm:$0xff]
    %v589 = vld [vmem:[%s10 + $0x8] sm:$0xff]
    %v590 = vld [vmem:[%s10 + $0x10] sm:$0xff]
    %v591 = vld [vmem:[%s10 + $0x18] sm:$0xff]
    %592 = vmatprep.subr.mxu0 0.0
    %593 = vmatpush1.msra.mxu0 %v588
    %594 = vmatprep.subr.mxu0 0.0
    %595 = vmatpush1.msra.mxu0 %v589
    %596 = vmatprep.subr.mxu0 0.0
    %597 = vmatpush1.msra.mxu0 %v590
    %598 = vmatprep.subr.mxu0 0.0
    %599 = vmatpush1.msra.mxu0 %v591
    %600 = vmatprep.subr.mxu0 0.0
    %601 = vmatpush1.msra.mxu0 0.0
    %602 = vmatprep.subr.mxu0 0.0
    %603 = vmatpush1.msra.mxu0 0.0
    %604 = vmatprep.subr.mxu0 0.0
    %605 = vmatpush1.msra.mxu0 0.0
    %606 = vmatprep.subr.mxu0 0.0
    %607 = vmatpush1.msra.mxu0 0.0
    %608 = vmatprep.subr.mxu0 0.0
    %609 = vmatpush1.msra.mxu0 0.0
    %610 = vmatprep.subr.mxu0 0.0
    %611 = vmatpush1.msra.mxu0 0.0
    %612 = vmatprep.subr.mxu0 0.0
    %613 = vmatpush1.msra.mxu0 0.0
    %614 = vmatprep.subr.mxu0 0.0
    %615 = vmatpush1.msra.mxu0 0.0
    %616 = vmatprep.subr.mxu0 0.0
    %617 = vmatpush1.msra.mxu0 0.0
    %618 = vmatprep.subr.mxu0 0.0
    %619 = vmatpush1.msra.mxu0 0.0
    %620 = vmatprep.subr.mxu0 0.0
    %621 = vmatpush1.msra.mxu0 0.0
    %622 = vmatprep.subr.mxu0 0.0
    %623 = vmatpush1.msra.mxu0 0.0
    %624 = vmatprep.subr.mxu0 0.0
    %625 = vmatpush1.msra.mxu0 0.0
    %626 = vmatprep.subr.mxu0 0.0
    %627 = vmatpush1.msra.mxu0 0.0
    %628 = vmatprep.subr.mxu0 0.0
    %629 = vmatpush1.msra.mxu0 0.0
    %630 = vmatprep.subr.mxu0 0.0
    %631 = vmatpush1.msra.mxu0 0.0
    %632 = vmatprep.subr.mxu0 0.0
    %633 = vmatpush1.msra.mxu0 0.0
    %634 = vmatprep.subr.mxu0 0.0
    %635 = vmatpush1.msra.mxu0 0.0
    %636 = vmatprep.subr.mxu0 0.0
    %637 = vmatpush1.msra.mxu0 0.0
    %638 = vmatprep.subr.mxu0 0.0
    %639 = vmatpush1.msra.mxu0 0.0
    %640 = vmatprep.subr.mxu0 0.0
    %641 = vmatpush1.msra.mxu0 0.0
    %642 = vmatprep.subr.mxu0 0.0
    %643 = vmatpush1.msra.mxu0 0.0
    %644 = vmatprep.subr.mxu0 0.0
    %645 = vmatpush1.msra.mxu0 0.0
    %646 = vmatprep.subr.mxu0 0.0
    %647 = vmatpush1.msra.mxu0 0.0
    %648 = vmatprep.subr.mxu0 0.0
    %649 = vmatpush1.msra.mxu0 0.0
    %650 = vmatprep.subr.mxu0 0.0
    %651 = vmatpush1.msra.mxu0 0.0
    %652 = vmatprep.subr.mxu0 0.0
    %653 = vmatpush1.msra.mxu0 0.0
    %654 = vmatprep.subr.mxu0 0.0
    %655 = vmatpush1.msra.mxu0 0.0
    %656 = vmatprep.mubr.f32.mxu0 0.0
    %657 = vmatmul.mubr.f32.gmra.mrb[0].mxu0 %v98
    %v658 = vpop.f32.mrb[0].mxu0
    %v659 = vadd.f32 0.0, %v658
    %v660 = vpop.f32.mrb[0].mxu0
    %661 = vdwg.mxu0
    %v662 = vadd.f32 %v585, %v659
    %v663 = vld [vmem:[#allocation5] sm:$0x1]
    %v665 = vlaneseq
    %v666 = vshrl.u32 %v665, 7
    %v667 = vsub.s32 0, %v666
    %v668 = vrot.slane %v663, %v667
    %v670 = vadd.f32 %v662, %v668
    %v671 = vxor.u32 %v670, 2147483648
    %v672 = vmul.f32 %v671, 1.442695
    %v673 = vpow.pop %v672
    %v674 = vadd.f32 %v673, 1.0
    %v675 = vrcp.pop %v674
    %v676 = vmul.f32 1.0, %v675
    %v677 = vtanh.pop %v670
    %679 = vrot.lane.b32.xlu0 %v89, 32
    %v680 = vpop.permute.xlu0 %679
    %v682 = vmul.f32 %v676, %v680
    %684 = vrot.lane.b32.xlu0 %v677, 64
    %v685 = vpop.permute.xlu0 %684
    %v687 = vmul.f32 %v676, %v685
    %689 = vrot.lane.b32.xlu0 %v687, 32
    %v690 = vpop.permute.xlu0 %689
    %v692 = vadd.f32 %v682, %v690
    %v693 = vtanh.pop %v692
    %695 = vrot.lane.b32.xlu0 %v693, 64
    %v696 = vpop.permute.xlu0 %695
    %v698 = vmul.f32 %v676, %v696
    %700 = vrot.lane.b32.xlu0 %v698, 32
    %v701 = vpop.permute.xlu0 %700
    %vm703 = vcmask 254976
    %704 = vst.msk [vmem:[#allocation10] sm:$0x3] %vm703, %v701
    %706 = vrot.lane.b32.xlu0 %v692, 96
    %v707 = vpop.permute.xlu0 %706
    %709 = vst.msk [vmem:[#allocation11] sm:$0x3] %vm703, %v707
    %v710 = vld [vmem:[%s12] sm:$0xff]
    %v711 = vld [vmem:[%s12 + $0x8] sm:$0xff]
    %v712 = vld [vmem:[%s12 + $0x10] sm:$0xff]
    %v713 = vld [vmem:[%s12 + $0x18] sm:$0xff]
    %v714 = vld [vmem:[%s13] sm:$0x1]
    %v716 = vlaneseq
    %v717 = vshrl.u32 %v716, 7
    %v718 = vsub.s32 0, %v717
    %v719 = vrot.slane %v714, %v718
    %v721 = vsel %vm96, %v701, 0
    %723 = vmatprep.subr.mxu0 0.0
    %724 = vmatpush1.msra.mxu0 %v710
    %725 = vmatprep.subr.mxu0 0.0
    %726 = vmatpush1.msra.mxu0 %v711
    %727 = vmatprep.subr.mxu0 0.0
    %728 = vmatpush1.msra.mxu0 %v712
    %729 = vmatprep.subr.mxu0 0.0
    %730 = vmatpush1.msra.mxu0 %v713
    %731 = vmatprep.subr.mxu0 0.0
    %732 = vmatpush1.msra.mxu0 0.0
    %733 = vmatprep.subr.mxu0 0.0
    %734 = vmatpush1.msra.mxu0 0.0
    %735 = vmatprep.subr.mxu0 0.0
    %736 = vmatpush1.msra.mxu0 0.0
    %737 = vmatprep.subr.mxu0 0.0
    %738 = vmatpush1.msra.mxu0 0.0
    %739 = vmatprep.subr.mxu0 0.0
    %740 = vmatpush1.msra.mxu0 0.0
    %741 = vmatprep.subr.mxu0 0.0
    %742 = vmatpush1.msra.mxu0 0.0
    %743 = vmatprep.subr.mxu0 0.0
    %744 = vmatpush1.msra.mxu0 0.0
    %745 = vmatprep.subr.mxu0 0.0
    %746 = vmatpush1.msra.mxu0 0.0
    %747 = vmatprep.subr.mxu0 0.0
    %748 = vmatpush1.msra.mxu0 0.0
    %749 = vmatprep.subr.mxu0 0.0
    %750 = vmatpush1.msra.mxu0 0.0
    %751 = vmatprep.subr.mxu0 0.0
    %752 = vmatpush1.msra.mxu0 0.0
    %753 = vmatprep.subr.mxu0 0.0
    %754 = vmatpush1.msra.mxu0 0.0
    %755 = vmatprep.subr.mxu0 0.0
    %756 = vmatpush1.msra.mxu0 0.0
    %757 = vmatprep.subr.mxu0 0.0
    %758 = vmatpush1.msra.mxu0 0.0
    %759 = vmatprep.subr.mxu0 0.0
    %760 = vmatpush1.msra.mxu0 0.0
    %761 = vmatprep.subr.mxu0 0.0
    %762 = vmatpush1.msra.mxu0 0.0
    %763 = vmatprep.subr.mxu0 0.0
    %764 = vmatpush1.msra.mxu0 0.0
    %765 = vmatprep.subr.mxu0 0.0
    %766 = vmatpush1.msra.mxu0 0.0
    %767 = vmatprep.subr.mxu0 0.0
    %768 = vmatpush1.msra.mxu0 0.0
    %769 = vmatprep.subr.mxu0 0.0
    %770 = vmatpush1.msra.mxu0 0.0
    %771 = vmatprep.subr.mxu0 0.0
    %772 = vmatpush1.msra.mxu0 0.0
    %773 = vmatprep.subr.mxu0 0.0
    %774 = vmatpush1.msra.mxu0 0.0
    %775 = vmatprep.subr.mxu0 0.0
    %776 = vmatpush1.msra.mxu0 0.0
    %777 = vmatprep.subr.mxu0 0.0
    %778 = vmatpush1.msra.mxu0 0.0
    %779 = vmatprep.subr.mxu0 0.0
    %780 = vmatpush1.msra.mxu0 0.0
    %781 = vmatprep.subr.mxu0 0.0
    %782 = vmatpush1.msra.mxu0 0.0
    %783 = vmatprep.subr.mxu0 0.0
    %784 = vmatpush1.msra.mxu0 0.0
    %785 = vmatprep.subr.mxu0 0.0
    %786 = vmatpush1.msra.mxu0 0.0
    %787 = vmatprep.mubr.f32.mxu0 0.0
    %788 = vmatmul.mubr.f32.gmra.mrb[0].mxu0 %v721
    %v789 = vpop.f32.mrb[0].mxu0
    %v790 = vadd.f32 %v719, %v789
    %v791 = vpop.f32.mrb[0].mxu0
    %792 = vdwg.mxu0
    %793 = vst [vmem:[#allocation7] sm:$0x3] %v790
    // Predicated region
    $region70: #{double_vocab_decode.1} parent=1 // pred_check
      _
    $region71: #{double_vocab_decode.1} parent=1 // pred_check_branch
      %795 = sbr.rel (0) target = $region73
    $region72: #{double_vocab_decode.1} parent=1 // pred_region
      %s797 = ssub.s32 32, 32
      %798 = vsyncadd [#allocation4], %s797
      %s800 = sshll.u32 [#allocation7], 4
      %s801 = int_to_ptr.vmem [resolvable:$true] %s800
      %803 = dma.vmem_to_hbm [thread:$0]  %s801, 32, %s14, [#allocation4]
    $region73: #{double_vocab_decode.1} parent=1 // pred_fallthru
      _
    // Predicated region
    $region74: #{double_vocab_decode.1} parent=1 // pred_check
      _
    $region75: #{double_vocab_decode.1} parent=1 // pred_check_branch
      %805 = sbr.rel (0) target = $region77
    $region76: #{double_vocab_decode.1} parent=1 // pred_region
      %s807 = ssub.s32 32, 32
      %808 = vsyncadd [#allocation9], %s807
      %s810 = sshll.u32 [#allocation8], 4
      %s811 = int_to_ptr.vmem [resolvable:$true] %s810
      %813 = dma.vmem_to_hbm [thread:$0]  %s811, 32, %s15, [#allocation9]
    $region77: #{double_vocab_decode.1} parent=1 // pred_fallthru
      _
    // Predicated region
    $region78: #{double_vocab_decode.1} parent=1 // pred_check
      _
    $region79: #{double_vocab_decode.1} parent=1 // pred_check_branch
      %815 = sbr.rel (0) target = $region81
    $region80: #{double_vocab_decode.1} parent=1 // pred_region
      %s817 = ssub.s32 32, 32
      %818 = vsyncadd [#allocation9], %s817
      %s820 = sshll.u32 [#allocation10], 4
      %s821 = int_to_ptr.vmem [resolvable:$true] %s820
      %823 = dma.vmem_to_hbm [thread:$0]  %s821, 32, %s16, [#allocation9]
    $region81: #{double_vocab_decode.1} parent=1 // pred_fallthru
      _
    // Predicated region
    $region82: #{double_vocab_decode.1} parent=1 // pred_check
      _
    $region83: #{double_vocab_decode.1} parent=1 // pred_check_branch
      %825 = sbr.rel (0) target = $region85
    $region84: #{double_vocab_decode.1} parent=1 // pred_region
      %s827 = ssub.s32 32, 32
      %828 = vsyncadd [#allocation12], %s827
      %s830 = sshll.u32 [#allocation11], 4
      %s831 = int_to_ptr.vmem [resolvable:$true] %s830
      %833 = dma.vmem_to_hbm [thread:$0]  %s831, 32, %s17, [#allocation12]
    $region85: #{double_vocab_decode.1} parent=1 // pred_fallthru
      _
    // Predicated region
    $region86: #{double_vocab_decode.1} parent=1 // pred_check
      _
    $region87: #{double_vocab_decode.1} parent=1 // pred_check_branch
      %835 = sbr.rel (0) target = $region89
    $region88: #{double_vocab_decode.1} parent=1 // pred_region
      %836 = dma.done [#allocation4], 32
    $region89: #{double_vocab_decode.1} parent=1 // pred_fallthru
      _
    // Predicated region
    $region90: #{double_vocab_decode.1} parent=1 // pred_check
      _
    $region91: #{double_vocab_decode.1} parent=1 // pred_check_branch
      %838 = sbr.rel (0) target = $region93
    $region92: #{double_vocab_decode.1} parent=1 // pred_region
      %839 = dma.done [#allocation9], 32
    $region93: #{double_vocab_decode.1} parent=1 // pred_fallthru
      _
    // Predicated region
    $region94: #{double_vocab_decode.1} parent=1 // pred_check
      _
    $region95: #{double_vocab_decode.1} parent=1 // pred_check_branch
      %841 = sbr.rel (0) target = $region97
    $region96: #{double_vocab_decode.1} parent=1 // pred_region
      %842 = dma.done [#allocation9], 32
    $region97: #{double_vocab_decode.1} parent=1 // pred_fallthru
      _
    // Predicated region
    $region98: #{double_vocab_decode.1} parent=1 // pred_check
      _
    $region99: #{double_vocab_decode.1} parent=1 // pred_check_branch
      %844 = sbr.rel (0) target = $region101
    $region100: #{double_vocab_decode.1} parent=1 // pred_region
      %845 = dma.done [#allocation12], 32
    $region101: #{double_vocab_decode.1} parent=1 // pred_fallthru
      _
    %846 = vsyncpa [#allocation3], 1
    %847 = vsyncpa [#allocation6], 1
    %848 = vsyncpa [#allocation4], 1
    %849 = vsyncpa [#allocation9], 1
    %850 = vsyncpa [#allocation12], 1

</llo_original>
